<compile_context>
chip_gen: v6e
topology: v6e:2x2x1
jax: 0.10.0
libtpu: 0.0.40
codegen_flags: <defaults>
</compile_context>

<pallas_src>
import jax
import jax.numpy as jnp
from jax.experimental import pallas as pl
from jax.experimental.pallas import tpu as pltpu


def _round_up(n, m):
    return ((n + m - 1) // m) * m


def _physical_vmem_bytes():
    """Per-TensorCore VMEM capacity; conservative fallback if unqueryable."""
    try:
        return int(pltpu.get_tpu_info().vmem_capacity_bytes)
    except Exception:
        return 64 << 20  # v7x per-TC size (smallest of the fleet); v5e/v6e have 128 MiB


def encoder_kernel(x_ref, w1_ref, b1_ref, wh_ref, bh_ref, out_ref):
    # Linear 1 on the MXU (f32 accumulation); bias + ReLU on the VPU in f32.
    hidden = jnp.dot(x_ref[...], w1_ref[...], preferred_element_type=jnp.float32)
    hidden = jnp.maximum(hidden + b1_ref[...], 0.0)
    # Fused, lane-dense mu|logvar|zero-pad head: one MXU matmul, unmasked stores.
    out = jnp.dot(hidden.astype(wh_ref.dtype), wh_ref[...],
                  preferred_element_type=jnp.float32)
    out_ref[...] = out + bh_ref[...]


def prepare_encoder_params(w1, b1, wmu, bmu, wvar, bvar, *,
                           matmul_dtype=jnp.float32):
    """One-time setup (do NOT call per forward): fuse the mu/logvar heads into a
    single lane-dense (H, Np) weight (Np = 2*latent rounded up to 128 columns,
    zero-padded), pre-cast matmul operands, keep biases in f32."""
    H = w1.shape[1]
    L = wmu.shape[1]
    cols = 2 * L
    Np = _round_up(cols, 128)

    w_head = jnp.concatenate([wmu, wvar], axis=1)
    b_head = jnp.concatenate(
        [jnp.reshape(bmu, (1, L)), jnp.reshape(bvar, (1, L))], axis=1)
    if Np != cols:
        w_head = jnp.pad(w_head, ((0, 0), (0, Np - cols)))
        b_head = jnp.pad(b_head, ((0, 0), (0, Np - cols)))

    return dict(
        w1=w1.astype(matmul_dtype),
        b1=jnp.reshape(b1, (1, H)).astype(jnp.float32),
        w_head=w_head.astype(matmul_dtype),
        b_head=b_head.astype(jnp.float32),
        latent_dim=L,
        matmul_dtype=matmul_dtype,
    )


def encoder_apply(x, params, *, block_b=1024, force_pallas=False,
                  min_pallas_batch=256, vmem_limit_bytes=None):
    """x: (B, input_dim + n_attrs). Returns (mu, logvar), each (B, latent_dim)."""
    w1, b1 = params["w1"], params["b1"]
    wh, bh = params["w_head"], params["b_head"]
    L = params["latent_dim"]
    matmul_dtype = params["matmul_dtype"]
    dsz = jnp.dtype(matmul_dtype).itemsize

    B, F = x.shape
    H = w1.shape[1]
    Np = wh.shape[1]

    xq = x.astype(matmul_dtype)

    def _xla_path():
        # Same math & dtype as the kernel path (f32 accumulation), so numerics
        # do not change across the batch-size gate.
        hidden = jnp.maximum(
            jnp.dot(xq, w1, preferred_element_type=jnp.float32) + b1, 0.0)
        out = jnp.dot(hidden.astype(matmul_dtype), wh,
                      preferred_element_type=jnp.float32) + bh
        return out[:, :L], out[:, L:2 * L]

    # VMEM budget: per-chip, and communicated to the compiler (vmem_limit_bytes)
    # so the tile-shrink loop below targets the real limit.
    if vmem_limit_bytes is None:
        vmem_limit_bytes = min(_physical_vmem_bytes() // 2, 96 << 20)
    vmem_limit_bytes = int(vmem_limit_bytes)
    budget = vmem_limit_bytes - (2 << 20)  # headroom for Mosaic internals

    def _vmem_bytes(tb_):
        x_tiles = 2 * tb_ * F * dsz                               # double-buffered x tiles
        o_tiles = 2 * tb_ * Np * 4                                # double-buffered out tiles
        weights = 2 * ((F * H + H * Np) * dsz + (H + Np) * 4)     # resident weights (default 2x buffers)
        interm = tb_ * H * 4 + tb_ * H * dsz + tb_ * Np * 4       # hidden f32 + cast + pre-bias out
        return x_tiles + o_tiles + weights + interm

    # Tiny batches are pallas_call-overhead bound -> plain XLA (same math).
    if not force_pallas and B < min_pallas_batch:
        return _xla_path()

    # TODO(synk): add a hidden-dim (K/N) tiling path for very large hidden_dim;
    # until then fall back to XLA when the weights alone do not fit the budget.
    if _vmem_bytes(8) > budget:
        return _xla_path()

    # Batch tile: sublane-aligned, capped by block_b, and split so the
    # "parallel" grid axis has >= 2 steps (keeps both v7x TensorCores busy).
    tb = min(_round_up(block_b, 8), _round_up(B, 8))
    if B > 8:
        tb = min(tb, _round_up(pl.cdiv(B, 2), 8))
    tb = max(tb, 8)
    while tb > 8 and _vmem_bytes(tb) > budget:
        tb = max(_round_up(tb // 2, 8), 8)

    grid = (pl.cdiv(B, tb),)  # ragged last block handled by Pallas; no host pad

    cost = pl.CostEstimate(
        flops=2 * B * (F * H + H * Np),
        transcendentals=0,
        bytes_accessed=(B * F + F * H + H * Np) * dsz + (H + Np) * 4 + B * Np * 4,
    )

    out = pl.pallas_call(
        encoder_kernel,
        out_shape=jax.ShapeDtypeStruct((B, Np), jnp.float32),
        grid=grid,
        in_specs=[
            pl.BlockSpec((tb, F), lambda i: (i, 0)),   # streamed x tiles
            pl.BlockSpec((F, H), lambda i: (0, 0)),    # resident weights / biases
            pl.BlockSpec((1, H), lambda i: (0, 0)),
            pl.BlockSpec((H, Np), lambda i: (0, 0)),
            pl.BlockSpec((1, Np), lambda i: (0, 0)),
        ],
        out_specs=pl.BlockSpec((tb, Np), lambda i: (i, 0)),
        compiler_params=pltpu.CompilerParams(
            dimension_semantics=("parallel",),          # megacore sharding on v7x
            vmem_limit_bytes=vmem_limit_bytes,
        ),
        cost_estimate=cost,
    )(xq, w1, b1, wh, bh)

    return out[:, :L], out[:, L:2 * L]


def encoder_forward(x, w1, b1, wmu, bmu, wvar, bvar, *,
                    matmul_dtype=jnp.float32, **apply_kwargs):
    """Convenience one-shot wrapper (prefer prepare_encoder_params + encoder_apply
    when weights are reused across calls)."""
    params = prepare_encoder_params(w1, b1, wmu, bmu, wvar, bvar,
                                    matmul_dtype=matmul_dtype)
    return encoder_apply(x, params, **apply_kwargs)


def init_linear(key, fan_in, fan_out):
    """nn.Linear-style init: U(-1/sqrt(fan_in), 1/sqrt(fan_in)).
    Weight returned as (fan_in, fan_out) so forward is x @ W + b."""
    kw, kb = jax.random.split(key)
    bound = 1.0 / jnp.sqrt(float(fan_in))
    w = jax.random.uniform(kw, (fan_in, fan_out), jnp.float32, -bound, bound)
    b = jax.random.uniform(kb, (1, fan_out), jnp.float32, -bound, bound)
    return w, b


if __name__ == "__main__":
    # Small shapes consistent with the module: x is (batch, input_dim + n_attrs)
    batch, input_dim, n_attrs, hidden_dim, latent_dim = 8, 24, 8, 32, 16
    in_features = input_dim + n_attrs

    key = jax.random.PRNGKey(0)
    kx, k1, k2, k3 = jax.random.split(key, 4)

    x = jax.random.normal(kx, (batch, in_features), jnp.float32)
    w1, b1 = init_linear(k1, in_features, hidden_dim)
    wmu, bmu = init_linear(k2, hidden_dim, latent_dim)
    wvar, bvar = init_linear(k3, hidden_dim, latent_dim)

    # Pure-JAX reference (same math as the PyTorch forward).
    hidden_ref = jnp.maximum(x @ w1 + b1, 0.0)
    mu_ref = hidden_ref @ wmu + bmu
    var_ref = hidden_ref @ wvar + bvar

    # f32 MXU path (default) — exact match against the reference.
    params32 = prepare_encoder_params(w1, b1, wmu, bmu, wvar, bvar,
                                      matmul_dtype=jnp.float32)
    mu32, var32 = encoder_apply(x, params32, force_pallas=True)
    jax.block_until_ready((mu32, var32))
    assert mu32.shape == (batch, latent_dim) and var32.shape == (batch, latent_dim)
    assert jnp.allclose(mu32, mu_ref, atol=1e-5, rtol=1e-5)
    assert jnp.allclose(var32, var_ref, atol=1e-5, rtol=1e-5)

    # bf16 MXU operands (f32 accumulation) — v6e/v7x fast path, loose tolerance.
    params16 = prepare_encoder_params(w1, b1, wmu, bmu, wvar, bvar,
                                      matmul_dtype=jnp.bfloat16)
    mu16, var16 = encoder_apply(x, params16, force_pallas=True)
    jax.block_until_ready((mu16, var16))
    assert jnp.allclose(mu16, mu_ref, atol=3e-2, rtol=3e-2)
    assert jnp.allclose(var16, var_ref, atol=3e-2, rtol=3e-2)

    # Ragged batch (B not a multiple of the tile) exercises the no-host-pad path
    # and the >=2-step grid split.
    xr = jax.random.normal(kx, (13, in_features), jnp.float32)
    mur, varr = encoder_apply(xr, params32, force_pallas=True)
    jax.block_until_ready((mur, varr))
    hr = jnp.maximum(xr @ w1 + b1, 0.0)
    assert jnp.allclose(mur, hr @ wmu + bmu, atol=1e-5, rtol=1e-5)
    assert jnp.allclose(varr, hr @ wvar + bvar, atol=1e-5, rtol=1e-5)

    print("KERNEL_OK")
</pallas_src>

<mosaic_0001>
module attributes {stable_mosaic.version = 11 : i64} {
  func.func @encoder_kernel(%arg0: i32, %arg1: memref<8x32xf32, #tpu.memory_space<vmem>>, %arg2: memref<32x32xf32, #tpu.memory_space<vmem>>, %arg3: memref<1x32xf32, #tpu.memory_space<vmem>>, %arg4: memref<32x128xf32, #tpu.memory_space<vmem>>, %arg5: memref<1x128xf32, #tpu.memory_space<vmem>>, %arg6: memref<8x128xf32, #tpu.memory_space<vmem>>) attributes {dimension_semantics = [#tpu.dimension_semantics<parallel>], iteration_bounds = array<i64: 1>, scalar_prefetch = 0 : i64, scratch_operands = 0 : i64, tpu.core_type = #tpu.core_type<tc>, window_params = [{transform_indices = @transform_0, window_bounds = array<i64: 8, 32>}, {pipeline_mode = #tpu.pipeline_mode<synchronous>, transform_indices = @transform_1, window_bounds = array<i64: 32, 32>}, {pipeline_mode = #tpu.pipeline_mode<synchronous>, transform_indices = @transform_2, window_bounds = array<i64: 1, 32>}, {pipeline_mode = #tpu.pipeline_mode<synchronous>, transform_indices = @transform_3, window_bounds = array<i64: 32, 128>}, {pipeline_mode = #tpu.pipeline_mode<synchronous>, transform_indices = @transform_4, window_bounds = array<i64: 1, 128>}, {transform_indices = @transform_5, window_bounds = array<i64: 8, 128>}]} {
    %c0 = arith.constant 0 : index
    %c0_0 = arith.constant 0 : index
    %0 = vector.load %arg1[%c0, %c0_0] : memref<8x32xf32, #tpu.memory_space<vmem>>, vector<8x32xf32>
    %c0_1 = arith.constant 0 : index
    %c0_2 = arith.constant 0 : index
    %1 = vector.load %arg2[%c0_1, %c0_2] : memref<32x32xf32, #tpu.memory_space<vmem>>, vector<32x32xf32>
    %cst = arith.constant dense<0.000000e+00> : vector<8x32xf32>
    %2 = tpu.matmul %0, %1, %cst {dimension_numbers = #tpu.dot_dimension_numbers<[1], [0], [0], [1], [0, 0, 1, 1], [], []>} : vector<8x32xf32>, vector<32x32xf32>, vector<8x32xf32> -> vector<8x32xf32>
    %c0_3 = arith.constant 0 : index
    %c0_4 = arith.constant 0 : index
    %3 = vector.load %arg3[%c0_3, %c0_4] : memref<1x32xf32, #tpu.memory_space<vmem>>, vector<1x32xf32>
    %4 = vector.broadcast %3 : vector<1x32xf32> to vector<8x32xf32>
    %5 = arith.addf %2, %4 : vector<8x32xf32>
    %cst_5 = arith.constant 0.000000e+00 : f32
    %6 = vector.broadcast %cst_5 : f32 to vector<8x32xf32>
    %7 = arith.maximumf %5, %6 : vector<8x32xf32>
    %c0_6 = arith.constant 0 : index
    %c0_7 = arith.constant 0 : index
    %8 = vector.load %arg4[%c0_6, %c0_7] : memref<32x128xf32, #tpu.memory_space<vmem>>, vector<32x128xf32>
    %cst_8 = arith.constant dense<0.000000e+00> : vector<8x128xf32>
    %9 = tpu.matmul %7, %8, %cst_8 {dimension_numbers = #tpu.dot_dimension_numbers<[1], [0], [0], [1], [0, 0, 1, 1], [], []>} : vector<8x32xf32>, vector<32x128xf32>, vector<8x128xf32> -> vector<8x128xf32>
    %c0_9 = arith.constant 0 : index
    %c0_10 = arith.constant 0 : index
    %10 = vector.load %arg5[%c0_9, %c0_10] : memref<1x128xf32, #tpu.memory_space<vmem>>, vector<1x128xf32>
    %11 = vector.broadcast %10 : vector<1x128xf32> to vector<8x128xf32>
    %12 = arith.addf %9, %11 : vector<8x128xf32>
    %c0_11 = arith.constant 0 : index
    %c0_12 = arith.constant 0 : index
    %13 = vector.load %arg6[%c0_11, %c0_12] : memref<8x128xf32, #tpu.memory_space<vmem>>, vector<8x128xf32>
    tpu.vector_store %arg6[%c0_11, %c0_12], %12 {strides = array<i32>} : memref<8x128xf32, #tpu.memory_space<vmem>>, vector<8x128xf32>,
    return
  }
  func.func @transform_0(%arg0: i32) -> (i32, i32) {
    %c0_i32 = arith.constant 0 : i32
    %c0_i32_0 = arith.constant 0 : i32
    return %arg0, %c0_i32 : i32, i32
  }
  func.func @transform_1(%arg0: i32) -> (i32, i32) {
    %c0_i32 = arith.constant 0 : i32
    %c0_i32_0 = arith.constant 0 : i32
    %c0_i32_1 = arith.constant 0 : i32
    return %c0_i32, %c0_i32_0 : i32, i32
  }
  func.func @transform_2(%arg0: i32) -> (i32, i32) {
    %c0_i32 = arith.constant 0 : i32
    %c0_i32_0 = arith.constant 0 : i32
    %c0_i32_1 = arith.constant 0 : i32
    return %c0_i32, %c0_i32_0 : i32, i32
  }
  func.func @transform_3(%arg0: i32) -> (i32, i32) {
    %c0_i32 = arith.constant 0 : i32
    %c0_i32_0 = arith.constant 0 : i32
    %c0_i32_1 = arith.constant 0 : i32
    return %c0_i32, %c0_i32_0 : i32, i32
  }
  func.func @transform_4(%arg0: i32) -> (i32, i32) {
    %c0_i32 = arith.constant 0 : i32
    %c0_i32_0 = arith.constant 0 : i32
    %c0_i32_1 = arith.constant 0 : i32
    return %c0_i32, %c0_i32_0 : i32, i32
  }
  func.func @transform_5(%arg0: i32) -> (i32, i32) {
    %c0_i32 = arith.constant 0 : i32
    %c0_i32_0 = arith.constant 0 : i32
    return %arg0, %c0_i32 : i32, i32
  }
}

</mosaic_0001>

<llo_original>
// kernel: tpu_custom_call.1
$region0: #{tpu_custom_call.1}
  #allocation0 [shape = 'u32[]', space=smem, size = 0x4, offset = 0x4, fixed_abs, tag = 'smem constant byte address 0x4 - core index']
  #allocation1 [shape = 'u32[144,128]{1,0:T(1,128)}', space=vmem, size = 0x12000, scoped, tag = 'internal scratch']
  %s0 = inlined_call_operand.hbm [shape: f32[8,32], index: 0, kind: input, shape index: {}]
  %s1 = inlined_call_operand.hbm [shape: f32[32,32], index: 1, kind: input, shape index: {}]
  %s2 = inlined_call_operand.vmem [shape: f32[1,32], index: 2, kind: input, shape index: {}]
  %s3 = inlined_call_operand.hbm [shape: f32[32,128], index: 3, kind: input, shape index: {}]
  %s4 = inlined_call_operand.vmem [shape: f32[1,128], index: 4, kind: input, shape index: {}]
  %s5 = inlined_call_operand.hbm [shape: f32[8,128], index: 5, kind: output, shape index: {}]
  %s6 = sld [smem:[#allocation0]]
  $region42: #{tpu_custom_call.1} parent=0
    _
  %s8 = ssub.s32 1, %s6
  %s9 = scalar_select 0, %s8, %s6
  $region1: #{tpu_custom_call.1} parent=0
    #allocation2 [shape = 'u8[4096]{0}', space=vmem, size = 0x1000, scoped, tag = 'input window, operand 0, single buffered']
    #allocation3 [shape = 's32[1]{0}', space=sflag, size = 0x4, scoped, tag = 'scoped memory for tpu_custom_call.1']
    #allocation4 [shape = 's32[1]{0}', space=sflag, size = 0x4, scoped, tag = 'scoped memory for tpu_custom_call.1']
    #allocation5 [shape = 'u8[16384]{0}', space=vmem, size = 0x4000, scoped, tag = 'input window, operand 1, single buffered']
    #allocation6 [shape = 's32[1]{0}', space=sflag, size = 0x4, scoped, tag = 'scoped memory for tpu_custom_call.1']
    #allocation7 [shape = 'u8[16384]{0}', space=vmem, size = 0x4000, scoped, tag = 'input window, operand 3, single buffered']
    #allocation8 [shape = 'u8[4096]{0}', space=vmem, size = 0x1000, scoped, tag = 'output window, operand 0, single buffered']
    %10 = vsyncpa [#allocation3], 0
    %11 = vsyncpa [#allocation6], 0
    %12 = vsyncpa [#allocation4], 0
    // Predicated region
    $region2: #{tpu_custom_call.1} parent=1 // pred_check
      _
    $region3: #{tpu_custom_call.1} parent=1 // pred_check_branch
      %14 = sbr.rel (0) target = $region5
    $region4: #{tpu_custom_call.1} parent=1 // pred_region
      %s16 = ssub.s32 128, 128
      %17 = vsyncadd [#allocation3], %s16
      %s19 = sshll.u32 [#allocation2], 4
      %s20 = int_to_ptr.vmem [resolvable:$true] %s19
      %22 = dma.hbm_to_vmem [thread:$0]  %s0, 128, %s20, [#allocation3]
    $region5: #{tpu_custom_call.1} parent=1 // pred_fallthru
      _
    // Predicated region
    $region6: #{tpu_custom_call.1} parent=1 // pred_check
      _
    $region7: #{tpu_custom_call.1} parent=1 // pred_check_branch
      %24 = sbr.rel (0) target = $region9
    $region8: #{tpu_custom_call.1} parent=1 // pred_region
      %s26 = ssub.s32 512, 512
      %27 = vsyncadd [#allocation6], %s26
      %s28 = sshll.u32 [#allocation5], 4
      %s29 = int_to_ptr.vmem [resolvable:$true] %s28
      %34 = dma.hbm_to_vmem [thread:$0]  %s1, 512, %s29, [#allocation6], 128, 128, 8
    $region9: #{tpu_custom_call.1} parent=1 // pred_fallthru
      _
    // Predicated region
    $region10: #{tpu_custom_call.1} parent=1 // pred_check
      _
    $region11: #{tpu_custom_call.1} parent=1 // pred_check_branch
      %36 = sbr.rel (0) target = $region13
    $region12: #{tpu_custom_call.1} parent=1 // pred_region
      _
    $region13: #{tpu_custom_call.1} parent=1 // pred_fallthru
      _
    // Predicated region
    $region14: #{tpu_custom_call.1} parent=1 // pred_check
      _
    $region15: #{tpu_custom_call.1} parent=1 // pred_check_branch
      %38 = sbr.rel (0) target = $region17
    $region16: #{tpu_custom_call.1} parent=1 // pred_region
      %s40 = ssub.s32 512, 512
      %41 = vsyncadd [#allocation6], %s40
      %s42 = sshll.u32 [#allocation7], 4
      %s43 = int_to_ptr.vmem [resolvable:$true] %s42
      %48 = dma.hbm_to_vmem [thread:$0]  %s3, 512, %s43, [#allocation6], 128, 128, 8
    $region17: #{tpu_custom_call.1} parent=1 // pred_fallthru
      _
    // Predicated region
    $region18: #{tpu_custom_call.1} parent=1 // pred_check
      _
    $region19: #{tpu_custom_call.1} parent=1 // pred_check_branch
      %50 = sbr.rel (0) target = $region21
    $region20: #{tpu_custom_call.1} parent=1 // pred_region
      _
    $region21: #{tpu_custom_call.1} parent=1 // pred_fallthru
      _
    // Predicated region
    $region22: #{tpu_custom_call.1} parent=1 // pred_check
      _
    $region23: #{tpu_custom_call.1} parent=1 // pred_check_branch
      %52 = sbr.rel (0) target = $region25
    $region24: #{tpu_custom_call.1} parent=1 // pred_region
      %53 = dma.done [#allocation3], 128
    $region25: #{tpu_custom_call.1} parent=1 // pred_fallthru
      _
    // Predicated region
    $region26: #{tpu_custom_call.1} parent=1 // pred_check
      _
    $region27: #{tpu_custom_call.1} parent=1 // pred_check_branch
      %55 = sbr.rel (0) target = $region29
    $region28: #{tpu_custom_call.1} parent=1 // pred_region
      %56 = dma.done [#allocation6], 512
    $region29: #{tpu_custom_call.1} parent=1 // pred_fallthru
      _
    // Predicated region
    $region30: #{tpu_custom_call.1} parent=1 // pred_check
      _
    $region31: #{tpu_custom_call.1} parent=1 // pred_check_branch
      %58 = sbr.rel (0) target = $region33
    $region32: #{tpu_custom_call.1} parent=1 // pred_region
      %59 = dma.done [#allocation6], 512
    $region33: #{tpu_custom_call.1} parent=1 // pred_fallthru
      _
    %v60 = vld [vmem:[#allocation2] sm:$0xff]
    %v61 = vld [vmem:[#allocation5] sm:$0xff]
    %v62 = vld [vmem:[#allocation5 + $0x8] sm:$0xff]
    %v63 = vld [vmem:[#allocation5 + $0x10] sm:$0xff]
    %v64 = vld [vmem:[#allocation5 + $0x18] sm:$0xff]
    %v65 = vld [vmem:[%s2] sm:$0x1]
    %v67 = vlaneseq
    %v68 = vshrl.u32 %v67, 7
    %v69 = vsub.s32 0, %v68
    %v70 = vrot.slane %v65, %v69
    %vm72 = vcmask 261120
    %v74 = vsel %vm72, %v60, 0
    %76 = vmatprep.subr.mxu0 0.0
    %77 = vmatpush1.msra.mxu0 0.0
    %78 = vmatprep.subr.mxu0 0.0
    %79 = vmatpush1.msra.mxu0 0.0
    %80 = vmatprep.subr.mxu0 0.0
    %81 = vmatpush1.msra.mxu0 0.0
    %82 = vmatprep.subr.mxu0 0.0
    %83 = vmatpush1.msra.mxu0 0.0
    %84 = vmatprep.subr.mxu0 0.0
    %85 = vmatpush1.msra.mxu0 0.0
    %86 = vmatprep.subr.mxu0 0.0
    %87 = vmatpush1.msra.mxu0 0.0
    %88 = vmatprep.subr.mxu0 0.0
    %89 = vmatpush1.msra.mxu0 0.0
    %90 = vmatprep.subr.mxu0 0.0
    %91 = vmatpush1.msra.mxu0 0.0
    %92 = vmatprep.subr.mxu0 0.0
    %93 = vmatpush1.msra.mxu0 0.0
    %94 = vmatprep.subr.mxu0 0.0
    %95 = vmatpush1.msra.mxu0 0.0
    %96 = vmatprep.subr.mxu0 0.0
    %97 = vmatpush1.msra.mxu0 0.0
    %98 = vmatprep.subr.mxu0 0.0
    %99 = vmatpush1.msra.mxu0 0.0
    %100 = vmatprep.subr.mxu0 0.0
    %101 = vmatpush1.msra.mxu0 %v64
    %102 = vmatprep.subr.mxu0 0.0
    %103 = vmatpush1.msra.mxu0 %v63
    %104 = vmatprep.subr.mxu0 0.0
    %105 = vmatpush1.msra.mxu0 %v62
    %106 = vmatprep.subr.mxu0 0.0
    %107 = vmatpush1.msra.mxu0 %v61
    %108 = vmatprep.subr.mxu0 0.0
    %109 = vmatpush2.msra.mxu0 0.0
    %110 = vmatprep.subr.mxu0 0.0
    %111 = vmatpush2.msra.mxu0 0.0
    %112 = vmatprep.subr.mxu0 0.0
    %113 = vmatpush2.msra.mxu0 0.0
    %114 = vmatprep.subr.mxu0 0.0
    %115 = vmatpush2.msra.mxu0 0.0
    %116 = vmatprep.subr.mxu0 0.0
    %117 = vmatpush2.msra.mxu0 0.0
    %118 = vmatprep.subr.mxu0 0.0
    %119 = vmatpush2.msra.mxu0 0.0
    %120 = vmatprep.subr.mxu0 0.0
    %121 = vmatpush2.msra.mxu0 0.0
    %122 = vmatprep.subr.mxu0 0.0
    %123 = vmatpush2.msra.mxu0 0.0
    %124 = vmatprep.subr.mxu0 0.0
    %125 = vmatpush2.msra.mxu0 0.0
    %126 = vmatprep.subr.mxu0 0.0
    %127 = vmatpush2.msra.mxu0 0.0
    %128 = vmatprep.subr.mxu0 0.0
    %129 = vmatpush2.msra.mxu0 0.0
    %130 = vmatprep.subr.mxu0 0.0
    %131 = vmatpush2.msra.mxu0 0.0
    %132 = vmatprep.subr.mxu0 0.0
    %133 = vmatpush2.msra.mxu0 0.0
    %134 = vmatprep.subr.mxu0 0.0
    %135 = vmatpush2.msra.mxu0 0.0
    %136 = vmatprep.subr.mxu0 0.0
    %137 = vmatpush2.msra.mxu0 0.0
    %138 = vmatprep.subr.mxu0 0.0
    %139 = vmatpush2.msra.mxu0 0.0
    %140 = vmatprep.mubr.f32.mxu0 0.0
    %141 = vmatmul.mubr.f32.gmra.mxu0 %v74
    %v142 = vpop.f32.mrf.mxu0
    %v143 = vadd.f32 %v70, %v142
    %v144 = vpop.f32.mrf.mxu0
    %145 = vdwg.mxu0
    %v146 = vmax.f32 %v143, 0.0
    %v147 = vld [vmem:[#allocation7] sm:$0xff]
    %v148 = vld [vmem:[#allocation7 + $0x8] sm:$0xff]
    %v149 = vld [vmem:[#allocation7 + $0x10] sm:$0xff]
    %v150 = vld [vmem:[#allocation7 + $0x18] sm:$0xff]
    %v151 = vld [vmem:[%s4] sm:$0x1]
    %v153 = vlaneseq
    %v154 = vshrl.u32 %v153, 7
    %v155 = vsub.s32 0, %v154
    %v156 = vrot.slane %v151, %v155
    %v159 = vsel %vm72, %v146, 0
    %161 = vmatprep.subr.mxu0 0.0
    %162 = vmatpush1.msra.mxu0 0.0
    %163 = vmatprep.subr.mxu0 0.0
    %164 = vmatpush1.msra.mxu0 0.0
    %165 = vmatprep.subr.mxu0 0.0
    %166 = vmatpush1.msra.mxu0 0.0
    %167 = vmatprep.subr.mxu0 0.0
    %168 = vmatpush1.msra.mxu0 0.0
    %169 = vmatprep.subr.mxu0 0.0
    %170 = vmatpush1.msra.mxu0 0.0
    %171 = vmatprep.subr.mxu0 0.0
    %172 = vmatpush1.msra.mxu0 0.0
    %173 = vmatprep.subr.mxu0 0.0
    %174 = vmatpush1.msra.mxu0 0.0
    %175 = vmatprep.subr.mxu0 0.0
    %176 = vmatpush1.msra.mxu0 0.0
    %177 = vmatprep.subr.mxu0 0.0
    %178 = vmatpush1.msra.mxu0 0.0
    %179 = vmatprep.subr.mxu0 0.0
    %180 = vmatpush1.msra.mxu0 0.0
    %181 = vmatprep.subr.mxu0 0.0
    %182 = vmatpush1.msra.mxu0 0.0
    %183 = vmatprep.subr.mxu0 0.0
    %184 = vmatpush1.msra.mxu0 0.0
    %185 = vmatprep.subr.mxu0 0.0
    %186 = vmatpush1.msra.mxu0 %v150
    %187 = vmatprep.subr.mxu0 0.0
    %188 = vmatpush1.msra.mxu0 %v149
    %189 = vmatprep.subr.mxu0 0.0
    %190 = vmatpush1.msra.mxu0 %v148
    %191 = vmatprep.subr.mxu0 0.0
    %192 = vmatpush1.msra.mxu0 %v147
    %193 = vmatprep.subr.mxu0 0.0
    %194 = vmatpush2.msra.mxu0 0.0
    %195 = vmatprep.subr.mxu0 0.0
    %196 = vmatpush2.msra.mxu0 0.0
    %197 = vmatprep.subr.mxu0 0.0
    %198 = vmatpush2.msra.mxu0 0.0
    %199 = vmatprep.subr.mxu0 0.0
    %200 = vmatpush2.msra.mxu0 0.0
    %201 = vmatprep.subr.mxu0 0.0
    %202 = vmatpush2.msra.mxu0 0.0
    %203 = vmatprep.subr.mxu0 0.0
    %204 = vmatpush2.msra.mxu0 0.0
    %205 = vmatprep.subr.mxu0 0.0
    %206 = vmatpush2.msra.mxu0 0.0
    %207 = vmatprep.subr.mxu0 0.0
    %208 = vmatpush2.msra.mxu0 0.0
    %209 = vmatprep.subr.mxu0 0.0
    %210 = vmatpush2.msra.mxu0 0.0
    %211 = vmatprep.subr.mxu0 0.0
    %212 = vmatpush2.msra.mxu0 0.0
    %213 = vmatprep.subr.mxu0 0.0
    %214 = vmatpush2.msra.mxu0 0.0
    %215 = vmatprep.subr.mxu0 0.0
    %216 = vmatpush2.msra.mxu0 0.0
    %217 = vmatprep.subr.mxu0 0.0
    %218 = vmatpush2.msra.mxu0 0.0
    %219 = vmatprep.subr.mxu0 0.0
    %220 = vmatpush2.msra.mxu0 0.0
    %221 = vmatprep.subr.mxu0 0.0
    %222 = vmatpush2.msra.mxu0 0.0
    %223 = vmatprep.subr.mxu0 0.0
    %224 = vmatpush2.msra.mxu0 0.0
    %225 = vmatprep.mubr.f32.mxu0 0.0
    %226 = vmatmul.mubr.f32.gmra.mxu0 %v159
    %v227 = vpop.f32.mrf.mxu0
    %v228 = vadd.f32 %v156, %v227
    %v229 = vpop.f32.mrf.mxu0
    %230 = vdwg.mxu0
    %231 = vst [vmem:[#allocation8] sm:$0xff] %v228
    // Predicated region
    $region34: #{tpu_custom_call.1} parent=1 // pred_check
      _
    $region35: #{tpu_custom_call.1} parent=1 // pred_check_branch
      %233 = sbr.rel (0) target = $region37
    $region36: #{tpu_custom_call.1} parent=1 // pred_region
      %s235 = ssub.s32 128, 128
      %236 = vsyncadd [#allocation4], %s235
      %s238 = sshll.u32 [#allocation8], 4
      %s239 = int_to_ptr.vmem [resolvable:$true] %s238
      %241 = dma.vmem_to_hbm [thread:$0]  %s239, 128, %s5, [#allocation4]
    $region37: #{tpu_custom_call.1} parent=1 // pred_fallthru
      _
    // Predicated region
    $region38: #{tpu_custom_call.1} parent=1 // pred_check
      _
    $region39: #{tpu_custom_call.1} parent=1 // pred_check_branch
      %243 = sbr.rel (0) target = $region41
    $region40: #{tpu_custom_call.1} parent=1 // pred_region
      %244 = dma.done [#allocation4], 128
    $region41: #{tpu_custom_call.1} parent=1 // pred_fallthru
      _
    %245 = vsyncpa [#allocation3], 1
    %246 = vsyncpa [#allocation6], 1
    %247 = vsyncpa [#allocation4], 1

</llo_original>
